<compile_context>
chip_gen: v7x
topology: tpu7x:2x2x1
jax: 0.10.0
libtpu: 0.0.40
codegen_flags: <defaults>
</compile_context>

<pallas_src>
import functools

import jax
import jax.numpy as jnp
from jax.experimental import pallas as pl
from jax.experimental.pallas import tpu as pltpu

_LANES = 128


def _round_up(x, m):
    return ((x + m - 1) // m) * m


# ---------------------------------------------------------------------------
# Kernels
# ---------------------------------------------------------------------------

def _packed_pool_linear_kernel(feat_ref, w_ref, b_ref, out_ref):
    # feat_ref: (b_tile, S, C_pack)  channels-last, lane-dense packed feature block
    # w_ref:    (C_pack, nattr)      weight pre-tiled G times and pre-scaled by 1/HW
    # b_ref:    (1, nattr)
    # out_ref:  (b_tile, nattr)
    f = feat_ref[...]
    if f.dtype != jnp.float32:
        f = f.astype(jnp.float32)            # bf16 input widens on load; acc stays f32
    pooled = jnp.sum(f, axis=1)              # (b_tile, C_pack); 1/HW folded into w_ref
    out_ref[...] = (
        jnp.dot(pooled, w_ref[...], preferred_element_type=jnp.float32) + b_ref[...]
    )


def _nchw_pool_linear_kernel(feat_ref, w_ref, b_ref, out_ref, *, inv_hw):
    # feat_ref: (b_tile, C, HW)  NCHW feature with spatial flattened (no wrapper transpose)
    # w_ref:    (C, nattr)
    # b_ref:    (1, nattr)
    # out_ref:  (b_tile, nattr)
    f = feat_ref[...]
    if f.dtype != jnp.float32:
        f = f.astype(jnp.float32)
    pooled = jnp.sum(f, axis=2)              # lane reduce (XLU slot), hidden under DMA
    dot = jnp.dot(pooled, w_ref[...], preferred_element_type=jnp.float32)
    out_ref[...] = dot * inv_hw + b_ref[...]  # scale the tiny (b_tile, nattr) result


# ---------------------------------------------------------------------------
# Tiling / VMEM policy (hardware-derived)
# ---------------------------------------------------------------------------

def _choose_tile_and_vmem(B, in_row_bytes, out_row_bytes, fixed_bytes):
    """Pick the batch tile and an explicit vmem_limit_bytes.

    Budget covers ALL buffers: 2x input tile + 2x output tile + resident weight/bias.
    Clamped to 48 MiB so tiles sized on v5e/v6e (128 MiB) still fit v7x (64 MiB) with
    headroom for compiler-internal scratch.
    """
    try:
        info = pltpu.get_tpu_info()
        vmem_cap = int(getattr(info, "vmem_capacity_bytes", 64 * 1024 * 1024))
    except Exception:  # pragma: no cover - conservative fallback
        vmem_cap = 64 * 1024 * 1024

    budget = min(int(0.45 * vmem_cap), 48 * 1024 * 1024)
    per_row = 2 * in_row_bytes + 2 * out_row_bytes
    max_rows = max(8, ((budget - fixed_bytes) // max(per_row, 1)) // 8 * 8)

    if B <= 8:
        b_tile = B
    else:
        b_tile = min(max_rows, (B // 8) * 8)           # multiple of 8, <= B
        if B >= 16:
            # At least 2 grid tiles so both v7x TensorCores get work (megacore).
            b_tile = min(b_tile, _round_up((B + 1) // 2, 8))
        b_tile = max(8, b_tile)

    footprint = per_row * b_tile + fixed_bytes
    vmem_limit = max(footprint + (4 << 20), 32 << 20)
    vmem_limit = min(vmem_limit, int(0.75 * vmem_cap))
    return int(b_tile), int(vmem_limit)


# ---------------------------------------------------------------------------
# pallas_call wrappers
# ---------------------------------------------------------------------------

def _pooled_linear_packed(feat_packed, w_packed, b_packed):
    """feat_packed: (B, S, C_pack) channels-last; returns (B, nattr) f32 logits."""
    B, S, C_pack = feat_packed.shape
    nattr = w_packed.shape[1]
    in_row = S * C_pack * feat_packed.dtype.itemsize
    out_row = nattr * 4
    fixed = 2 * (w_packed.size + b_packed.size) * 4
    b_tile, vmem_limit = _choose_tile_and_vmem(B, in_row, out_row, fixed)
    grid = (pl.cdiv(B, b_tile),)             # partial last tile handled by masking

    return pl.pallas_call(
        _packed_pool_linear_kernel,
        out_shape=jax.ShapeDtypeStruct((B, nattr), jnp.float32),
        grid_spec=pltpu.PrefetchScalarGridSpec(
            num_scalar_prefetch=0,
            grid=grid,
            in_specs=[
                pl.BlockSpec((b_tile, S, C_pack), lambda i: (i, 0, 0)),
                pl.BlockSpec((C_pack, nattr), lambda i: (0, 0)),   # VMEM-resident weight
                pl.BlockSpec((1, nattr), lambda i: (0, 0)),        # VMEM-resident bias
            ],
            out_specs=pl.BlockSpec((b_tile, nattr), lambda i: (i, 0)),
        ),
        compiler_params=pltpu.CompilerParams(
            dimension_semantics=("parallel",),     # shard B tiles across TCs
            vmem_limit_bytes=vmem_limit,
        ),
    )(feat_packed, w_packed, b_packed)


def _pooled_linear_nchw(feat_nchw_flat, w_plain, b_packed, hw):
    """feat_nchw_flat: (B, C, HW); pooling fused in-kernel, no wrapper relayout."""
    B, C, HW = feat_nchw_flat.shape
    nattr = w_plain.shape[1]
    in_row = C * HW * feat_nchw_flat.dtype.itemsize
    out_row = nattr * 4
    fixed = 2 * (w_plain.size + b_packed.size) * 4
    b_tile, vmem_limit = _choose_tile_and_vmem(B, in_row, out_row, fixed)
    grid = (pl.cdiv(B, b_tile),)

    kern = functools.partial(_nchw_pool_linear_kernel, inv_hw=1.0 / float(hw))
    return pl.pallas_call(
        kern,
        out_shape=jax.ShapeDtypeStruct((B, nattr), jnp.float32),
        grid_spec=pltpu.PrefetchScalarGridSpec(
            num_scalar_prefetch=0,
            grid=grid,
            in_specs=[
                pl.BlockSpec((b_tile, C, HW), lambda i: (i, 0, 0)),
                pl.BlockSpec((C, nattr), lambda i: (0, 0)),
                pl.BlockSpec((1, nattr), lambda i: (0, 0)),
            ],
            out_specs=pl.BlockSpec((b_tile, nattr), lambda i: (i, 0)),
        ),
        compiler_params=pltpu.CompilerParams(
            dimension_semantics=("parallel",),
            vmem_limit_bytes=vmem_limit,
        ),
    )(feat_nchw_flat, w_plain, b_packed)


# ---------------------------------------------------------------------------
# Module-level API
# ---------------------------------------------------------------------------

def prepare_linear_classifier_params(weight, bias, hw_3d=16 * 12):
    """One-time (init-time) packing of the Linear(c_in, nattr) params.

    weight: (c_in, nattr) -- the transposed torch Linear weight
    bias:   (nattr,)
    Folds the 1/HW avg-pool scale and the G-way lane fold into the weight used by
    the 3D channels-last path (kernel is then just sum -> dot -> add).
    """
    C, nattr = weight.shape
    w_plain = weight.astype(jnp.float32)
    b = bias.astype(jnp.float32).reshape(1, nattr)
    G = 1
    if C < _LANES and _LANES % C == 0:
        G = _LANES // C
        while G > 1 and hw_3d % G != 0:
            G //= 2
    w_packed = jnp.tile(w_plain, (G, 1)) * (1.0 / float(hw_3d))   # (G*C, nattr)
    return dict(w_plain=w_plain, w_packed=w_packed, b=b, G=G, hw_3d=hw_3d,
                c_in=C, nattr=nattr)


def linear_classifier_forward(feature, params, pool="avg", nchw_feature_out=True):
    """Mirror of LinearClassifier.forward (bn=False). Returns ([x], feature_out)."""
    if pool != "avg":
        # TODO(synk): pool='max' (AdaptiveMaxPool2d) variant not implemented; module default is 'avg'.
        raise NotImplementedError("only pool='avg' is implemented")

    if feature.ndim == 3:
        bt, hw, c = feature.shape
        h, w = 16, 12                        # hardcoded in the PyTorch module
        if hw != h * w:
            raise ValueError(f"3D feature expects HW == {h * w}, got {hw}")
        if c != params["c_in"] or hw != params["hw_3d"]:
            raise ValueError("feature shape does not match prepared params")
        G = params["G"]
        # contiguous reshape, zero-copy: fold G spatial positions onto the lane axis
        feat_packed = feature.reshape(bt, hw // G, G * c)
        x = _pooled_linear_packed(feat_packed, params["w_packed"], params["b"])
        if nchw_feature_out:
            # PyTorch returns the feature permuted to NCHW; this is a full-size XLA
            # layout copy. Pass nchw_feature_out=False when the consumer accepts
            # channels-last and this extra HBM pass disappears.
            feature_out = feature.reshape(bt, h, w, c).transpose(0, 3, 1, 2)
        else:
            feature_out = feature.reshape(bt, h, w, c)   # channels-last, zero-copy
        return [x], feature_out

    if feature.ndim == 2:
        # 2D path: no pooling (S=1, scale=1) -- reuse the packed kernel.
        x = _pooled_linear_packed(feature[:, None, :], params["w_plain"], params["b"])
        return [x], feature

    if feature.ndim == 4:
        # NCHW path: pool inside the kernel over flattened spatial (contiguous reshape
        # only, no wrapper transpose -> ~3x less HBM traffic on this branch).
        b_, c_, h_, w_ = feature.shape
        x = _pooled_linear_nchw(feature.reshape(b_, c_, h_ * w_),
                                params["w_plain"], params["b"], h_ * w_)
        return [x], feature

    raise ValueError(f"unsupported feature rank {feature.ndim}")


# ---------------------------------------------------------------------------
# Self-test
# ---------------------------------------------------------------------------

if __name__ == "__main__":
    # Module config: c_in=32, nattr=8, bn=False, pool='avg'
    c_in, nattr = 32, 8
    B, H, W = 2, 16, 12                      # 3D input path expects HW = 16*12 = 192

    key = jax.random.PRNGKey(0)
    k_feat, k_w, k_b = jax.random.split(key, 3)

    feature = jax.random.normal(k_feat, (B, H * W, c_in), dtype=jnp.float32)

    # Synthetic nn.Linear(c_in, nattr) params: torch weight is (nattr, c_in), bias (nattr,)
    bound = 1.0 / (c_in ** 0.5)
    w_torch = jax.random.uniform(k_w, (nattr, c_in), minval=-bound, maxval=bound,
                                 dtype=jnp.float32)
    bias = jax.random.uniform(k_b, (nattr,), minval=-bound, maxval=bound,
                              dtype=jnp.float32)
    weight = w_torch.T                       # kernel-side layout (c_in, nattr)

    params = prepare_linear_classifier_params(weight, bias)   # one-time, init-side

    # --- 3D path (B=2, native module shape) ---
    logits_list, feat_out = linear_classifier_forward(feature, params)
    x = logits_list[0]
    jax.block_until_ready(x)
    jax.block_until_ready(feat_out)
    x_ref = jnp.mean(feature, axis=1) @ weight + bias
    assert x.shape == (B, nattr)
    assert feat_out.shape == (B, c_in, H, W)
    assert jnp.allclose(x, x_ref, atol=1e-5, rtol=1e-5)

    # --- 3D path, channels-last feature_out (skips the relayout copy) ---
    _, feat_out_cl = linear_classifier_forward(feature, params, nchw_feature_out=False)
    jax.block_until_ready(feat_out_cl)
    assert feat_out_cl.shape == (B, H, W, c_in)

    # --- 3D path with non-divisible batch (exercises the masked partial last tile) ---
    feat_b10 = jax.random.normal(k_w, (10, H * W, c_in), dtype=jnp.float32)
    x10 = linear_classifier_forward(feat_b10, params)[0][0]
    jax.block_until_ready(x10)
    x10_ref = jnp.mean(feat_b10, axis=1) @ weight + bias
    assert jnp.allclose(x10, x10_ref, atol=1e-5, rtol=1e-5)

    # --- 3D path with bf16 features (no wrapper pre-cast; kernel widens on load) ---
    feat_bf16 = feature.astype(jnp.bfloat16)
    xbf = linear_classifier_forward(feat_bf16, params)[0][0]
    jax.block_until_ready(xbf)
    xbf_ref = jnp.mean(feat_bf16.astype(jnp.float32), axis=1) @ weight + bias
    assert jnp.allclose(xbf, xbf_ref, atol=1e-4, rtol=1e-4)

    # --- 2D path (no pooling) ---
    feat2d = jax.random.normal(k_feat, (B, c_in), dtype=jnp.float32)
    logits2_list, feat2_out = linear_classifier_forward(feat2d, params)
    x2 = logits2_list[0]
    jax.block_until_ready(x2)
    assert x2.shape == (B, nattr)
    assert feat2_out.shape == (B, c_in)
    assert jnp.allclose(x2, feat2d @ weight + bias, atol=1e-5, rtol=1e-5)

    # --- 4D NCHW path (pooling fused in-kernel, no wrapper transpose) ---
    feat4d = jax.random.normal(k_b, (B, c_in, H, W), dtype=jnp.float32)
    logits4_list, feat4_out = linear_classifier_forward(feat4d, params)
    x4 = logits4_list[0]
    jax.block_until_ready(x4)
    x4_ref = jnp.mean(feat4d.reshape(B, c_in, -1), axis=-1) @ weight + bias
    assert x4.shape == (B, nattr)
    assert feat4_out.shape == (B, c_in, H, W)
    assert jnp.allclose(x4, x4_ref, atol=1e-5, rtol=1e-5)

    print("KERNEL_OK")
</pallas_src>

<mosaic_0001>
module attributes {stable_mosaic.version = 11 : i64} {
  func.func @_packed_pool_linear_kernel(%arg0: i32, %arg1: memref<2x48x128xf32, #tpu.memory_space<vmem>>, %arg2: memref<128x8xf32, #tpu.memory_space<vmem>>, %arg3: memref<1x8xf32, #tpu.memory_space<vmem>>, %arg4: memref<2x8xf32, #tpu.memory_space<vmem>>) attributes {dimension_semantics = [#tpu.dimension_semantics<parallel>], iteration_bounds = array<i64: 1>, scalar_prefetch = 0 : i64, scratch_operands = 0 : i64, tpu.core_type = #tpu.core_type<tc>, window_params = [{transform_indices = @transform_0, window_bounds = array<i64: 2, 48, 128>}, {pipeline_mode = #tpu.pipeline_mode<synchronous>, transform_indices = @transform_1, window_bounds = array<i64: 128, 8>}, {pipeline_mode = #tpu.pipeline_mode<synchronous>, transform_indices = @transform_2, window_bounds = array<i64: 1, 8>}, {transform_indices = @transform_3, window_bounds = array<i64: 2, 8>}]} {
    %c0 = arith.constant 0 : index
    %c0_0 = arith.constant 0 : index
    %c0_1 = arith.constant 0 : index
    %0 = vector.load %arg1[%c0, %c0_0, %c0_1] : memref<2x48x128xf32, #tpu.memory_space<vmem>>, vector<2x48x128xf32>
    %cst = arith.constant dense<0.000000e+00> : vector<2x128xf32>
    %1 = vector.multi_reduction <add>, %0, %cst [1] : vector<2x48x128xf32> to vector<2x128xf32>
    %c0_2 = arith.constant 0 : index
    %c0_3 = arith.constant 0 : index
    %2 = vector.load %arg2[%c0_2, %c0_3] : memref<128x8xf32, #tpu.memory_space<vmem>>, vector<128x8xf32>
    %cst_4 = arith.constant dense<0.000000e+00> : vector<2x8xf32>
    %3 = tpu.matmul %1, %2, %cst_4 {dimension_numbers = #tpu.dot_dimension_numbers<[1], [0], [0], [1], [0, 0, 1, 1], [], []>} : vector<2x128xf32>, vector<128x8xf32>, vector<2x8xf32> -> vector<2x8xf32>
    %c0_5 = arith.constant 0 : index
    %c0_6 = arith.constant 0 : index
    %4 = vector.load %arg3[%c0_5, %c0_6] : memref<1x8xf32, #tpu.memory_space<vmem>>, vector<1x8xf32>
    %5 = vector.broadcast %4 : vector<1x8xf32> to vector<2x8xf32>
    %6 = arith.addf %3, %5 : vector<2x8xf32>
    %c0_7 = arith.constant 0 : index
    %c0_8 = arith.constant 0 : index
    %7 = vector.load %arg4[%c0_7, %c0_8] : memref<2x8xf32, #tpu.memory_space<vmem>>, vector<2x8xf32>
    tpu.vector_store %arg4[%c0_7, %c0_8], %6 {strides = array<i32>} : memref<2x8xf32, #tpu.memory_space<vmem>>, vector<2x8xf32>,
    return
  }
  func.func @transform_0(%arg0: i32) -> (i32, i32, i32) {
    %c0_i32 = arith.constant 0 : i32
    %c0_i32_0 = arith.constant 0 : i32
    %c0_i32_1 = arith.constant 0 : i32
    return %arg0, %c0_i32, %c0_i32_0 : i32, i32, i32
  }
  func.func @transform_1(%arg0: i32) -> (i32, i32) {
    %c0_i32 = arith.constant 0 : i32
    %c0_i32_0 = arith.constant 0 : i32
    %c0_i32_1 = arith.constant 0 : i32
    return %c0_i32, %c0_i32_0 : i32, i32
  }
  func.func @transform_2(%arg0: i32) -> (i32, i32) {
    %c0_i32 = arith.constant 0 : i32
    %c0_i32_0 = arith.constant 0 : i32
    %c0_i32_1 = arith.constant 0 : i32
    return %c0_i32, %c0_i32_0 : i32, i32
  }
  func.func @transform_3(%arg0: i32) -> (i32, i32) {
    %c0_i32 = arith.constant 0 : i32
    %c0_i32_0 = arith.constant 0 : i32
    return %arg0, %c0_i32 : i32, i32
  }
}

</mosaic_0001>

<llo_original>
// kernel: tpu_custom_call.1
$region0: #{tpu_custom_call.1}
  #allocation0 [shape = 'u32[]', space=smem, size = 0x4, offset = 0x4, fixed_abs, tag = 'smem constant byte address 0x4 - core index']
  #allocation1 [shape = 'u32[144,128]{1,0:T(1,128)}', space=vmem, size = 0x12000, scoped, tag = 'internal scratch']
  %s0 = inlined_call_operand.vmem [shape: f32[2,48,128], index: 0, kind: input, shape index: {}]
  %s1 = inlined_call_operand.vmem [shape: f32[128,8], index: 1, kind: input, shape index: {}]
  %s2 = inlined_call_operand.vmem [shape: f32[1,8], index: 2, kind: input, shape index: {}]
  %s3 = inlined_call_operand.hbm [shape: f32[2,8], index: 3, kind: output, shape index: {}]
  %s4 = sld [smem:[#allocation0]]
  $region22: #{tpu_custom_call.1} parent=0
    _
  %s6 = ssub.s32 1, %s4
  %s7 = scalar_select 0, %s6, %s4
  $region1: #{tpu_custom_call.1} parent=0
    #allocation2 [shape = 'u8[1024]{0}', space=vmem, size = 0x400, scoped, tag = 'output window, operand 0, single buffered']
    #allocation3 [shape = 's32[1]{0}', space=sflag, size = 0x4, scoped, tag = 'scoped memory for tpu_custom_call.1']
    %8 = vsyncpa [#allocation3], 0
    // Predicated region
    $region2: #{tpu_custom_call.1} parent=1 // pred_check
      _
    $region3: #{tpu_custom_call.1} parent=1 // pred_check_branch
      %10 = sbr.rel (0) target = $region5
    $region4: #{tpu_custom_call.1} parent=1 // pred_region
      _
    $region5: #{tpu_custom_call.1} parent=1 // pred_fallthru
      _
    // Predicated region
    $region6: #{tpu_custom_call.1} parent=1 // pred_check
      _
    $region7: #{tpu_custom_call.1} parent=1 // pred_check_branch
      %12 = sbr.rel (0) target = $region9
    $region8: #{tpu_custom_call.1} parent=1 // pred_region
      _
    $region9: #{tpu_custom_call.1} parent=1 // pred_fallthru
      _
    // Predicated region
    $region10: #{tpu_custom_call.1} parent=1 // pred_check
      _
    $region11: #{tpu_custom_call.1} parent=1 // pred_check_branch
      %14 = sbr.rel (0) target = $region13
    $region12: #{tpu_custom_call.1} parent=1 // pred_region
      _
    $region13: #{tpu_custom_call.1} parent=1 // pred_fallthru
      _
    %v15 = vld [vmem:[%s0] sm:$0xff]
    %v16 = vld [vmem:[%s0 + $0x8] sm:$0xff]
    %v17 = vld [vmem:[%s0 + $0x10] sm:$0xff]
    %v18 = vld [vmem:[%s0 + $0x18] sm:$0xff]
    %v19 = vld [vmem:[%s0 + $0x20] sm:$0xff]
    %v20 = vld [vmem:[%s0 + $0x28] sm:$0xff]
    %v21 = vld [vmem:[%s0 + $0x30] sm:$0xff]
    %v22 = vld [vmem:[%s0 + $0x38] sm:$0xff]
    %v23 = vld [vmem:[%s0 + $0x40] sm:$0xff]
    %v24 = vld [vmem:[%s0 + $0x48] sm:$0xff]
    %v25 = vld [vmem:[%s0 + $0x50] sm:$0xff]
    %v26 = vld [vmem:[%s0 + $0x58] sm:$0xff]
    %v27 = vadd.f32 %v15, %v16
    %v28 = vadd.f32 %v27, %v17
    %v29 = vadd.f32 %v28, %v18
    %v30 = vadd.f32 %v29, %v19
    %v31 = vadd.f32 %v30, %v20
    %v32 = vrot.slane %v31, 4
    %v33 = vadd.f32 %v31, %v32
    %v34 = vrot.slane %v33, 2
    %v35 = vadd.f32 %v33, %v34
    %v36 = vrot.slane %v35, 1
    %v37 = vadd.f32 %v35, %v36
    %v38 = vadd.f32 %v21, %v22
    %v39 = vadd.f32 %v38, %v23
    %v40 = vadd.f32 %v39, %v24
    %v41 = vadd.f32 %v40, %v25
    %v42 = vadd.f32 %v41, %v26
    %v43 = vrot.slane %v42, 4
    %v44 = vadd.f32 %v42, %v43
    %v45 = vrot.slane %v44, 2
    %v46 = vadd.f32 %v44, %v45
    %v47 = vrot.slane %v46, 1
    %v48 = vadd.f32 %v46, %v47
    %v49 = vld [vmem:[%s1] sm:$0xff]
    %v50 = vld [vmem:[%s1 + $0x8] sm:$0xff]
    %v51 = vld [vmem:[%s1 + $0x10] sm:$0xff]
    %v52 = vld [vmem:[%s1 + $0x18] sm:$0xff]
    %v53 = vld [vmem:[%s1 + $0x20] sm:$0xff]
    %v54 = vld [vmem:[%s1 + $0x28] sm:$0xff]
    %v55 = vld [vmem:[%s1 + $0x30] sm:$0xff]
    %v56 = vld [vmem:[%s1 + $0x38] sm:$0xff]
    %v57 = vld [vmem:[%s1 + $0x40] sm:$0xff]
    %v58 = vld [vmem:[%s1 + $0x48] sm:$0xff]
    %v59 = vld [vmem:[%s1 + $0x50] sm:$0xff]
    %v60 = vld [vmem:[%s1 + $0x58] sm:$0xff]
    %v61 = vld [vmem:[%s1 + $0x60] sm:$0xff]
    %v62 = vld [vmem:[%s1 + $0x68] sm:$0xff]
    %v63 = vld [vmem:[%s1 + $0x70] sm:$0xff]
    %v64 = vld [vmem:[%s1 + $0x78] sm:$0xff]
    %v65 = vld [vmem:[%s2] sm:$0x1]
    %v67 = vlaneseq
    %v68 = vshrl.u32 %v67, 7
    %v69 = vsub.s32 0, %v68
    %v70 = vrot.slane %v65, %v69
    %vm74 = vcmask 1041409
    %v75 = vsel %vm74, %v48, %v37
    %77 = vmatprep.subr.mxu0 0.0
    %78 = vmatpush1.msra.mxu0 %v49
    %79 = vmatprep.subr.mxu0 0.0
    %80 = vmatpush1.msra.mxu0 %v50
    %81 = vmatprep.subr.mxu0 0.0
    %82 = vmatpush1.msra.mxu0 %v51
    %83 = vmatprep.subr.mxu0 0.0
    %84 = vmatpush1.msra.mxu0 %v52
    %85 = vmatprep.subr.mxu0 0.0
    %86 = vmatpush1.msra.mxu0 %v53
    %87 = vmatprep.subr.mxu0 0.0
    %88 = vmatpush1.msra.mxu0 %v54
    %89 = vmatprep.subr.mxu0 0.0
    %90 = vmatpush1.msra.mxu0 %v55
    %91 = vmatprep.subr.mxu0 0.0
    %92 = vmatpush1.msra.mxu0 %v56
    %93 = vmatprep.subr.mxu0 0.0
    %94 = vmatpush1.msra.mxu0 %v57
    %95 = vmatprep.subr.mxu0 0.0
    %96 = vmatpush1.msra.mxu0 %v58
    %97 = vmatprep.subr.mxu0 0.0
    %98 = vmatpush1.msra.mxu0 %v59
    %99 = vmatprep.subr.mxu0 0.0
    %100 = vmatpush1.msra.mxu0 %v60
    %101 = vmatprep.subr.mxu0 0.0
    %102 = vmatpush1.msra.mxu0 %v61
    %103 = vmatprep.subr.mxu0 0.0
    %104 = vmatpush1.msra.mxu0 %v62
    %105 = vmatprep.subr.mxu0 0.0
    %106 = vmatpush1.msra.mxu0 %v63
    %107 = vmatprep.subr.mxu0 0.0
    %108 = vmatpush1.msra.mxu0 %v64
    %109 = vmatprep.subr.mxu0 0.0
    %110 = vmatpush1.msra.mxu0 0.0
    %111 = vmatprep.subr.mxu0 0.0
    %112 = vmatpush1.msra.mxu0 0.0
    %113 = vmatprep.subr.mxu0 0.0
    %114 = vmatpush1.msra.mxu0 0.0
    %115 = vmatprep.subr.mxu0 0.0
    %116 = vmatpush1.msra.mxu0 0.0
    %117 = vmatprep.subr.mxu0 0.0
    %118 = vmatpush1.msra.mxu0 0.0
    %119 = vmatprep.subr.mxu0 0.0
    %120 = vmatpush1.msra.mxu0 0.0
    %121 = vmatprep.subr.mxu0 0.0
    %122 = vmatpush1.msra.mxu0 0.0
    %123 = vmatprep.subr.mxu0 0.0
    %124 = vmatpush1.msra.mxu0 0.0
    %125 = vmatprep.subr.mxu0 0.0
    %126 = vmatpush1.msra.mxu0 0.0
    %127 = vmatprep.subr.mxu0 0.0
    %128 = vmatpush1.msra.mxu0 0.0
    %129 = vmatprep.subr.mxu0 0.0
    %130 = vmatpush1.msra.mxu0 0.0
    %131 = vmatprep.subr.mxu0 0.0
    %132 = vmatpush1.msra.mxu0 0.0
    %133 = vmatprep.subr.mxu0 0.0
    %134 = vmatpush1.msra.mxu0 0.0
    %135 = vmatprep.subr.mxu0 0.0
    %136 = vmatpush1.msra.mxu0 0.0
    %137 = vmatprep.subr.mxu0 0.0
    %138 = vmatpush1.msra.mxu0 0.0
    %139 = vmatprep.subr.mxu0 0.0
    %140 = vmatpush1.msra.mxu0 0.0
    %141 = vmatprep.mubr.f32.mxu0 0.0
    %142 = vmatmul.mubr.f32.gmra.mrb[0].mxu0 %v75
    %v143 = vpop.f32.mrb[0].mxu0
    %v144 = vadd.f32 %v70, %v143
    %v145 = vpop.f32.mrb[0].mxu0
    %146 = vdwg.mxu0
    %vm147 = vcmask 58368
    %148 = vst.msk [vmem:[#allocation2] sm:$0x3] %vm147, %v144
    // Predicated region
    $region14: #{tpu_custom_call.1} parent=1 // pred_check
      _
    $region15: #{tpu_custom_call.1} parent=1 // pred_check_branch
      %150 = sbr.rel (0) target = $region17
    $region16: #{tpu_custom_call.1} parent=1 // pred_region
      %s152 = ssub.s32 32, 32
      %153 = vsyncadd [#allocation3], %s152
      %s155 = sshll.u32 [#allocation2], 4
      %s156 = int_to_ptr.vmem [resolvable:$true] %s155
      %158 = dma.vmem_to_hbm [thread:$0]  %s156, 32, %s3, [#allocation3]
    $region17: #{tpu_custom_call.1} parent=1 // pred_fallthru
      _
    // Predicated region
    $region18: #{tpu_custom_call.1} parent=1 // pred_check
      _
    $region19: #{tpu_custom_call.1} parent=1 // pred_check_branch
      %160 = sbr.rel (0) target = $region21
    $region20: #{tpu_custom_call.1} parent=1 // pred_region
      %161 = dma.done [#allocation3], 32
    $region21: #{tpu_custom_call.1} parent=1 // pred_fallthru
      _
    %162 = vsyncpa [#allocation3], 1

</llo_original>
